<compile_context>
chip_gen: v7x
topology: tpu7x:2x2x1
jax: 0.10.0
libtpu: 0.0.40
codegen_flags: <defaults>
</compile_context>

<pallas_src>
import functools

import jax
import jax.numpy as jnp
from jax.experimental import pallas as pl
from jax.experimental.pallas import tpu as pltpu


# ------------------------------ Pallas kernel -------------------------------

def morph2d_kernel(x_ref, k_ref, b_ref, p_ref, o_ref, xp_ref, *, K, H, W):
    """One (batch, channel-block) tile of Morph2d.

    x_ref : (1, Cb, H, W)        input tile (NCHW layout, W on lanes)
    k_ref : (K*K, Cb, 1, 1)      per-channel kernel weights, tap-major
    b_ref : (Cb, 1, 1)           per-channel bias
    p_ref : (Cb, 1, 1)           per-channel percentile
    o_ref : (1, Cb, H, W)        output tile
    xp_ref: (Cb, H+K-1, W+K-1)   VMEM scratch: padded (+bias) feature map
    """
    pad = (K - 1) // 2
    b10 = b_ref[...] * 10.0                          # bias_scaling = 10.0

    # In-kernel padding: F.pad(x, 0) followed by "+ bias*10"
    #   => border == b10, interior == x + b10.  (No jnp.pad HBM round trip.)
    xp_ref[...] = jnp.broadcast_to(b10, xp_ref.shape)
    xp_ref[:, pad:pad + H, pad:pad + W] = x_ref[0].astype(jnp.float32) + b10
    xp = xp_ref[...]

    # K*K static taps; running min/max keeps only two live planes.
    # TODO(synk): for large H,W the shifted windows could use pltpu.roll (XLU)
    # instead of value slices to avoid materialized VMEM copies.
    mx = None
    mn = None
    for dh in range(K):
        for dw in range(K):
            v = xp[:, dh:dh + H, dw:dw + W] * k_ref[dh * K + dw]
            mx = v if mx is None else jnp.maximum(mx, v)
            mn = v if mn is None else jnp.minimum(mn, v)

    gate = jax.nn.sigmoid(p_ref[...] * 10.0)         # percentile_scaling = 10.0
    y = mn + (mx - mn) * gate - b10
    o_ref[0] = y.astype(o_ref.dtype)


# --------------------------------- wrapper ----------------------------------

def _channel_block(C, cap=8):
    for cb in range(min(C, cap), 0, -1):
        if C % cb == 0:
            return cb
    return 1


def morph2d_pallas(x, kernel, bias, percentile, *, channel_block=None):
    """x: (N, C, H, W); kernel: (1, C, K, K); bias, percentile: (C,)."""
    N, C, H, W = x.shape
    K = kernel.shape[-1]
    assert kernel.shape == (1, C, K, K), "square kernel expected"
    pad = (K - 1) // 2
    Cb = channel_block or _channel_block(C)
    assert C % Cb == 0

    # Tap-major layout (K*K, C, 1, 1): k_ref[t] broadcasts over a (Cb, H, W) slab.
    k_r = jnp.transpose(kernel.astype(jnp.float32).reshape(C, K * K), (1, 0))
    k_r = k_r.reshape(K * K, C, 1, 1)
    b_r = bias.astype(jnp.float32).reshape(C, 1, 1)
    p_r = percentile.astype(jnp.float32).reshape(C, 1, 1)

    return pl.pallas_call(
        functools.partial(morph2d_kernel, K=K, H=H, W=W),
        out_shape=jax.ShapeDtypeStruct((N, C, H, W), x.dtype),
        grid=(N, C // Cb),
        in_specs=[
            pl.BlockSpec((1, Cb, H, W), lambda n, c: (n, c, 0, 0)),
            pl.BlockSpec((K * K, Cb, 1, 1), lambda n, c: (0, c, 0, 0)),
            pl.BlockSpec((Cb, 1, 1), lambda n, c: (c, 0, 0)),
            pl.BlockSpec((Cb, 1, 1), lambda n, c: (c, 0, 0)),
        ],
        out_specs=pl.BlockSpec((1, Cb, H, W), lambda n, c: (n, c, 0, 0)),
        scratch_shapes=[pltpu.VMEM((Cb, H + 2 * pad, W + 2 * pad), jnp.float32)],
        compiler_params=pltpu.CompilerParams(
            dimension_semantics=("parallel", "parallel")),
    )(x, k_r, b_r, p_r)


# ---------------------------- pure-JAX reference ----------------------------

def morph2d_reference(x, kernel, bias, percentile):
    N, C, H, W = x.shape
    K = kernel.shape[-1]
    pad = (K - 1) // 2
    b10 = (bias * 10.0).reshape(1, C, 1, 1)
    xp = jnp.pad(x.astype(jnp.float32),
                 ((0, 0), (0, 0), (pad, pad), (pad, pad))) + b10
    mx = mn = None
    for dh in range(K):
        for dw in range(K):
            w = kernel[0, :, dh, dw].reshape(1, C, 1, 1).astype(jnp.float32)
            v = xp[:, :, dh:dh + H, dw:dw + W] * w
            mx = v if mx is None else jnp.maximum(mx, v)
            mn = v if mn is None else jnp.minimum(mn, v)
    gate = jax.nn.sigmoid(percentile.astype(jnp.float32) * 10.0).reshape(1, C, 1, 1)
    return (mn + (mx - mn) * gate - b10).astype(x.dtype)


# ----------------------------------- main ------------------------------------

if __name__ == "__main__":
    N, C, H, W, K = 2, 4, 16, 16, 3

    key = jax.random.PRNGKey(0)
    kx, kk, kb, kp = jax.random.split(key, 4)
    x = jax.random.normal(kx, (N, C, H, W), jnp.float32)
    # Morph2d init: kernel ~ trunc_normal(mean=1, std=0.05) (plain normal here),
    # bias / percentile initialized near 0.
    kernel = 1.0 + 0.05 * jax.random.normal(kk, (1, C, K, K), jnp.float32)
    bias = 0.05 * jax.random.normal(kb, (C,), jnp.float32)
    percentile = 0.1 * jax.random.normal(kp, (C,), jnp.float32)

    out = morph2d_pallas(x, kernel, bias, percentile)
    out = jax.block_until_ready(out)

    ref = morph2d_reference(x, kernel, bias, percentile)
    assert out.shape == (N, C, H, W)
    assert jnp.allclose(out, ref, rtol=1e-4, atol=1e-4), "Morph2d output mismatch"
    print("KERNEL_OK")
</pallas_src>

<mosaic_0001>
module attributes {stable_mosaic.version = 11 : i64} {
  func.func @morph2d_kernel(%arg0: i32, %arg1: i32, %arg2: memref<1x4x16x16xf32, #tpu.memory_space<vmem>>, %arg3: memref<9x4x1x1xf32, #tpu.memory_space<vmem>>, %arg4: memref<4x1x1xf32, #tpu.memory_space<vmem>>, %arg5: memref<4x1x1xf32, #tpu.memory_space<vmem>>, %arg6: memref<1x4x16x16xf32, #tpu.memory_space<vmem>>, %arg7: memref<4x18x18xf32, #tpu.memory_space<vmem>>) attributes {dimension_semantics = [#tpu.dimension_semantics<parallel>, #tpu.dimension_semantics<parallel>], iteration_bounds = array<i64: 2, 1>, scalar_prefetch = 0 : i64, scratch_operands = 1 : i64, tpu.core_type = #tpu.core_type<tc>, window_params = [{transform_indices = @transform_0, window_bounds = array<i64: 1, 4, 16, 16>}, {transform_indices = @transform_1, window_bounds = array<i64: 9, 4, 1, 1>}, {transform_indices = @transform_2, window_bounds = array<i64: 4, 1, 1>}, {transform_indices = @transform_3, window_bounds = array<i64: 4, 1, 1>}, {transform_indices = @transform_4, window_bounds = array<i64: 1, 4, 16, 16>}]} {
    %c0 = arith.constant 0 : index
    %c0_0 = arith.constant 0 : index
    %c0_1 = arith.constant 0 : index
    %0 = vector.load %arg4[%c0, %c0_0, %c0_1] : memref<4x1x1xf32, #tpu.memory_space<vmem>>, vector<4x1x1xf32>
    %cst = arith.constant 1.000000e+01 : f32
    %1 = vector.broadcast %cst : f32 to vector<4x1x1xf32>
    %2 = arith.mulf %0, %1 : vector<4x1x1xf32>
    %3 = vector.shape_cast %2 : vector<4x1x1xf32> to vector<4x1x1xf32>
    %4 = vector.broadcast %3 : vector<4x1x1xf32> to vector<4x18x18xf32>
    %c0_2 = arith.constant 0 : index
    %c0_3 = arith.constant 0 : index
    %c0_4 = arith.constant 0 : index
    %5 = vector.load %arg7[%c0_2, %c0_3, %c0_4] : memref<4x18x18xf32, #tpu.memory_space<vmem>>, vector<4x18x18xf32>
    tpu.vector_store %arg7[%c0_2, %c0_3, %c0_4], %4 {strides = array<i32>} : memref<4x18x18xf32, #tpu.memory_space<vmem>>, vector<4x18x18xf32>,
    %c0_5 = arith.constant 0 : index
    %c0_6 = arith.constant 0 : index
    %c0_7 = arith.constant 0 : index
    %c0_8 = arith.constant 0 : index
    %6 = vector.load %arg2[%c0_5, %c0_6, %c0_7, %c0_8] : memref<1x4x16x16xf32, #tpu.memory_space<vmem>>, vector<1x4x16x16xf32>
    %7 = vector.shape_cast %6 : vector<1x4x16x16xf32> to vector<4x16x16xf32>
    %8 = vector.broadcast %2 : vector<4x1x1xf32> to vector<4x16x16xf32>
    %9 = arith.addf %7, %8 : vector<4x16x16xf32>
    %c0_9 = arith.constant 0 : index
    %c1 = arith.constant 1 : index
    %c1_10 = arith.constant 1 : index
    %10 = vector.load %arg7[%c0_9, %c1, %c1_10] : memref<4x18x18xf32, #tpu.memory_space<vmem>>, vector<4x16x16xf32>
    tpu.vector_store %arg7[%c0_9, %c1, %c1_10], %9 {strides = array<i32>} : memref<4x18x18xf32, #tpu.memory_space<vmem>>, vector<4x16x16xf32>,
    %c0_11 = arith.constant 0 : index
    %c0_12 = arith.constant 0 : index
    %c0_13 = arith.constant 0 : index
    %11 = vector.load %arg7[%c0_11, %c0_12, %c0_13] : memref<4x18x18xf32, #tpu.memory_space<vmem>>, vector<4x18x18xf32>
    %12 = vector.extract_strided_slice %11 {offsets = [0, 0, 0], sizes = [4, 16, 16], strides = [1, 1, 1]} : vector<4x18x18xf32> to vector<4x16x16xf32>
    %c0_14 = arith.constant 0 : index
    %c0_15 = arith.constant 0 : index
    %c0_16 = arith.constant 0 : index
    %c0_17 = arith.constant 0 : index
    %13 = vector.load %arg3[%c0_14, %c0_15, %c0_16, %c0_17] : memref<9x4x1x1xf32, #tpu.memory_space<vmem>>, vector<1x4x1x1xf32>
    %14 = vector.shape_cast %13 : vector<1x4x1x1xf32> to vector<4x1x1xf32>
    %15 = vector.broadcast %14 : vector<4x1x1xf32> to vector<4x16x16xf32>
    %16 = arith.mulf %12, %15 : vector<4x16x16xf32>
    %17 = vector.extract_strided_slice %11 {offsets = [0, 0, 1], sizes = [4, 16, 16], strides = [1, 1, 1]} : vector<4x18x18xf32> to vector<4x16x16xf32>
    %c1_18 = arith.constant 1 : index
    %c0_19 = arith.constant 0 : index
    %c0_20 = arith.constant 0 : index
    %c0_21 = arith.constant 0 : index
    %18 = vector.load %arg3[%c1_18, %c0_19, %c0_20, %c0_21] : memref<9x4x1x1xf32, #tpu.memory_space<vmem>>, vector<1x4x1x1xf32>
    %19 = vector.shape_cast %18 : vector<1x4x1x1xf32> to vector<4x1x1xf32>
    %20 = vector.broadcast %19 : vector<4x1x1xf32> to vector<4x16x16xf32>
    %21 = arith.mulf %17, %20 : vector<4x16x16xf32>
    %22 = arith.maximumf %16, %21 : vector<4x16x16xf32>
    %23 = arith.minimumf %16, %21 : vector<4x16x16xf32>
    %24 = vector.extract_strided_slice %11 {offsets = [0, 0, 2], sizes = [4, 16, 16], strides = [1, 1, 1]} : vector<4x18x18xf32> to vector<4x16x16xf32>
    %c2 = arith.constant 2 : index
    %c0_22 = arith.constant 0 : index
    %c0_23 = arith.constant 0 : index
    %c0_24 = arith.constant 0 : index
    %25 = vector.load %arg3[%c2, %c0_22, %c0_23, %c0_24] : memref<9x4x1x1xf32, #tpu.memory_space<vmem>>, vector<1x4x1x1xf32>
    %26 = vector.shape_cast %25 : vector<1x4x1x1xf32> to vector<4x1x1xf32>
    %27 = vector.broadcast %26 : vector<4x1x1xf32> to vector<4x16x16xf32>
    %28 = arith.mulf %24, %27 : vector<4x16x16xf32>
    %29 = arith.maximumf %22, %28 : vector<4x16x16xf32>
    %30 = arith.minimumf %23, %28 : vector<4x16x16xf32>
    %31 = vector.extract_strided_slice %11 {offsets = [0, 1, 0], sizes = [4, 16, 16], strides = [1, 1, 1]} : vector<4x18x18xf32> to vector<4x16x16xf32>
    %c3 = arith.constant 3 : index
    %c0_25 = arith.constant 0 : index
    %c0_26 = arith.constant 0 : index
    %c0_27 = arith.constant 0 : index
    %32 = vector.load %arg3[%c3, %c0_25, %c0_26, %c0_27] : memref<9x4x1x1xf32, #tpu.memory_space<vmem>>, vector<1x4x1x1xf32>
    %33 = vector.shape_cast %32 : vector<1x4x1x1xf32> to vector<4x1x1xf32>
    %34 = vector.broadcast %33 : vector<4x1x1xf32> to vector<4x16x16xf32>
    %35 = arith.mulf %31, %34 : vector<4x16x16xf32>
    %36 = arith.maximumf %29, %35 : vector<4x16x16xf32>
    %37 = arith.minimumf %30, %35 : vector<4x16x16xf32>
    %38 = vector.extract_strided_slice %11 {offsets = [0, 1, 1], sizes = [4, 16, 16], strides = [1, 1, 1]} : vector<4x18x18xf32> to vector<4x16x16xf32>
    %c4 = arith.constant 4 : index
    %c0_28 = arith.constant 0 : index
    %c0_29 = arith.constant 0 : index
    %c0_30 = arith.constant 0 : index
    %39 = vector.load %arg3[%c4, %c0_28, %c0_29, %c0_30] : memref<9x4x1x1xf32, #tpu.memory_space<vmem>>, vector<1x4x1x1xf32>
    %40 = vector.shape_cast %39 : vector<1x4x1x1xf32> to vector<4x1x1xf32>
    %41 = vector.broadcast %40 : vector<4x1x1xf32> to vector<4x16x16xf32>
    %42 = arith.mulf %38, %41 : vector<4x16x16xf32>
    %43 = arith.maximumf %36, %42 : vector<4x16x16xf32>
    %44 = arith.minimumf %37, %42 : vector<4x16x16xf32>
    %45 = vector.extract_strided_slice %11 {offsets = [0, 1, 2], sizes = [4, 16, 16], strides = [1, 1, 1]} : vector<4x18x18xf32> to vector<4x16x16xf32>
    %c5 = arith.constant 5 : index
    %c0_31 = arith.constant 0 : index
    %c0_32 = arith.constant 0 : index
    %c0_33 = arith.constant 0 : index
    %46 = vector.load %arg3[%c5, %c0_31, %c0_32, %c0_33] : memref<9x4x1x1xf32, #tpu.memory_space<vmem>>, vector<1x4x1x1xf32>
    %47 = vector.shape_cast %46 : vector<1x4x1x1xf32> to vector<4x1x1xf32>
    %48 = vector.broadcast %47 : vector<4x1x1xf32> to vector<4x16x16xf32>
    %49 = arith.mulf %45, %48 : vector<4x16x16xf32>
    %50 = arith.maximumf %43, %49 : vector<4x16x16xf32>
    %51 = arith.minimumf %44, %49 : vector<4x16x16xf32>
    %52 = vector.extract_strided_slice %11 {offsets = [0, 2, 0], sizes = [4, 16, 16], strides = [1, 1, 1]} : vector<4x18x18xf32> to vector<4x16x16xf32>
    %c6 = arith.constant 6 : index
    %c0_34 = arith.constant 0 : index
    %c0_35 = arith.constant 0 : index
    %c0_36 = arith.constant 0 : index
    %53 = vector.load %arg3[%c6, %c0_34, %c0_35, %c0_36] : memref<9x4x1x1xf32, #tpu.memory_space<vmem>>, vector<1x4x1x1xf32>
    %54 = vector.shape_cast %53 : vector<1x4x1x1xf32> to vector<4x1x1xf32>
    %55 = vector.broadcast %54 : vector<4x1x1xf32> to vector<4x16x16xf32>
    %56 = arith.mulf %52, %55 : vector<4x16x16xf32>
    %57 = arith.maximumf %50, %56 : vector<4x16x16xf32>
    %58 = arith.minimumf %51, %56 : vector<4x16x16xf32>
    %59 = vector.extract_strided_slice %11 {offsets = [0, 2, 1], sizes = [4, 16, 16], strides = [1, 1, 1]} : vector<4x18x18xf32> to vector<4x16x16xf32>
    %c7 = arith.constant 7 : index
    %c0_37 = arith.constant 0 : index
    %c0_38 = arith.constant 0 : index
    %c0_39 = arith.constant 0 : index
    %60 = vector.load %arg3[%c7, %c0_37, %c0_38, %c0_39] : memref<9x4x1x1xf32, #tpu.memory_space<vmem>>, vector<1x4x1x1xf32>
    %61 = vector.shape_cast %60 : vector<1x4x1x1xf32> to vector<4x1x1xf32>
    %62 = vector.broadcast %61 : vector<4x1x1xf32> to vector<4x16x16xf32>
    %63 = arith.mulf %59, %62 : vector<4x16x16xf32>
    %64 = arith.maximumf %57, %63 : vector<4x16x16xf32>
    %65 = arith.minimumf %58, %63 : vector<4x16x16xf32>
    %66 = vector.extract_strided_slice %11 {offsets = [0, 2, 2], sizes = [4, 16, 16], strides = [1, 1, 1]} : vector<4x18x18xf32> to vector<4x16x16xf32>
    %c8 = arith.constant 8 : index
    %c0_40 = arith.constant 0 : index
    %c0_41 = arith.constant 0 : index
    %c0_42 = arith.constant 0 : index
    %67 = vector.load %arg3[%c8, %c0_40, %c0_41, %c0_42] : memref<9x4x1x1xf32, #tpu.memory_space<vmem>>, vector<1x4x1x1xf32>
    %68 = vector.shape_cast %67 : vector<1x4x1x1xf32> to vector<4x1x1xf32>
    %69 = vector.broadcast %68 : vector<4x1x1xf32> to vector<4x16x16xf32>
    %70 = arith.mulf %66, %69 : vector<4x16x16xf32>
    %71 = arith.maximumf %64, %70 : vector<4x16x16xf32>
    %72 = arith.minimumf %65, %70 : vector<4x16x16xf32>
    %c0_43 = arith.constant 0 : index
    %c0_44 = arith.constant 0 : index
    %c0_45 = arith.constant 0 : index
    %73 = vector.load %arg5[%c0_43, %c0_44, %c0_45] : memref<4x1x1xf32, #tpu.memory_space<vmem>>, vector<4x1x1xf32>
    %cst_46 = arith.constant 1.000000e+01 : f32
    %74 = vector.broadcast %cst_46 : f32 to vector<4x1x1xf32>
    %75 = arith.mulf %73, %74 : vector<4x1x1xf32>
    %76 = arith.negf %75 : vector<4x1x1xf32>
    %77 = math.exp %76 : vector<4x1x1xf32>
    %cst_47 = arith.constant 1.000000e+00 : f32
    %78 = vector.broadcast %cst_47 : f32 to vector<4x1x1xf32>
    %79 = arith.addf %78, %77 : vector<4x1x1xf32>
    %80 = arith.divf %78, %79 : vector<4x1x1xf32>
    %81 = arith.subf %71, %72 : vector<4x16x16xf32>
    %82 = vector.broadcast %80 : vector<4x1x1xf32> to vector<4x16x16xf32>
    %83 = arith.mulf %81, %82 : vector<4x16x16xf32>
    %84 = arith.addf %72, %83 : vector<4x16x16xf32>
    %85 = vector.broadcast %2 : vector<4x1x1xf32> to vector<4x16x16xf32>
    %86 = arith.subf %84, %85 : vector<4x16x16xf32>
    %c0_48 = arith.constant 0 : index
    %c0_49 = arith.constant 0 : index
    %c0_50 = arith.constant 0 : index
    %c0_51 = arith.constant 0 : index
    %87 = vector.load %arg6[%c0_48, %c0_49, %c0_50, %c0_51] : memref<1x4x16x16xf32, #tpu.memory_space<vmem>>, vector<1x4x16x16xf32>
    %88 = vector.shape_cast %87 : vector<1x4x16x16xf32> to vector<4x16x16xf32>
    %89 = vector.shape_cast %86 : vector<4x16x16xf32> to vector<1x4x16x16xf32>
    tpu.vector_store %arg6[%c0_48, %c0_49, %c0_50, %c0_51], %89 {strides = array<i32>} : memref<1x4x16x16xf32, #tpu.memory_space<vmem>>, vector<1x4x16x16xf32>,
    return
  }
  func.func @transform_0(%arg0: i32, %arg1: i32) -> (i32, i32, i32, i32) {
    %c0_i32 = arith.constant 0 : i32
    %c0_i32_0 = arith.constant 0 : i32
    %c0_i32_1 = arith.constant 0 : i32
    return %arg0, %arg1, %c0_i32, %c0_i32_0 : i32, i32, i32, i32
  }
  func.func @transform_1(%arg0: i32, %arg1: i32) -> (i32, i32, i32, i32) {
    %c0_i32 = arith.constant 0 : i32
    %c0_i32_0 = arith.constant 0 : i32
    %c0_i32_1 = arith.constant 0 : i32
    %c0_i32_2 = arith.constant 0 : i32
    return %c0_i32, %arg1, %c0_i32_0, %c0_i32_1 : i32, i32, i32, i32
  }
  func.func @transform_2(%arg0: i32, %arg1: i32) -> (i32, i32, i32) {
    %c0_i32 = arith.constant 0 : i32
    %c0_i32_0 = arith.constant 0 : i32
    %c0_i32_1 = arith.constant 0 : i32
    return %arg1, %c0_i32, %c0_i32_0 : i32, i32, i32
  }
  func.func @transform_3(%arg0: i32, %arg1: i32) -> (i32, i32, i32) {
    %c0_i32 = arith.constant 0 : i32
    %c0_i32_0 = arith.constant 0 : i32
    %c0_i32_1 = arith.constant 0 : i32
    return %arg1, %c0_i32, %c0_i32_0 : i32, i32, i32
  }
  func.func @transform_4(%arg0: i32, %arg1: i32) -> (i32, i32, i32, i32) {
    %c0_i32 = arith.constant 0 : i32
    %c0_i32_0 = arith.constant 0 : i32
    %c0_i32_1 = arith.constant 0 : i32
    return %arg0, %arg1, %c0_i32, %c0_i32_0 : i32, i32, i32, i32
  }
}

</mosaic_0001>

<llo_original>
// kernel: tpu_custom_call.1
$region0: #{tpu_custom_call.1}
  #allocation0 [shape = 'u32[]', space=smem, size = 0x4, offset = 0x4, fixed_abs, tag = 'smem constant byte address 0x4 - core index']
  #allocation1 [shape = 'u32[144,128]{1,0:T(1,128)}', space=vmem, size = 0x12000, scoped, tag = 'internal scratch']
  #allocation2 [shape = 'f32[4,18,18]{2,1,0:T(8,128)}', space=vmem, size = 0xc000, scoped, tag = 'scratch operand']
  %s0 = inlined_call_operand.hbm [shape: f32[2,4,16,16], index: 0, kind: input, shape index: {}]
  %s1 = inlined_call_operand.vmem [shape: f32[9,4,1,1], index: 1, kind: input, shape index: {}]
  %s2 = inlined_call_operand.vmem [shape: f32[4,1,1], index: 2, kind: input, shape index: {}]
  %s3 = inlined_call_operand.vmem [shape: f32[4,1,1], index: 3, kind: input, shape index: {}]
  %s4 = inlined_call_operand.hbm [shape: f32[2,4,16,16], index: 4, kind: output, shape index: {}]
  %s5 = sld [smem:[#allocation0]]
  $region53: #{tpu_custom_call.1} parent=0
    _
  %s7 = ssub.s32 1, %s5
  %s8 = scalar_select 0, %s7, %s5
  $region1: #{tpu_custom_call.1} parent=0
    #allocation3 [shape = 'u8[65536]{0}', space=vmem, size = 0x10000, scoped, tag = 'input window, operand 0']
    #allocation4 [shape = 's32[2]{0}', space=sflag, size = 0x8, scoped, tag = 'scoped memory for tpu_custom_call.1']
    #allocation5 [shape = 's32[2]{0}', space=sflag, size = 0x8, scoped, tag = 'scoped memory for tpu_custom_call.1']
    #allocation6 [shape = 'u8[65536]{0}', space=vmem, size = 0x10000, scoped, tag = 'output window, operand 0']
    %9 = vsyncpa [#allocation4], 0
    %s10 = scalar_lea.sflag [#allocation4], 1
    %11 = vsyncpa %s10, 0
    %12 = vsyncpa [#allocation5], 0
    %s13 = scalar_lea.sflag [#allocation5], 1
    %14 = vsyncpa %s13, 0
    loop: start=0, step=1, limit=4
    $region2: #{tpu_custom_call.1} parent=1 // loop_pre_header
      _
    $region3: #{tpu_custom_call.1} parent=1 // loop_header
      %s16 = sphi 0, %s20
      %p17 = scmp.ge.s32.totalorder %s16, 4
      %s23 = sphi 0, %s35
      %s24 = sphi 0, %s31
      %s25 = sphi 0, %s23
      %s26 = sphi 0, %s24
      %s27 = sphi 0, %s25
      %s28 = sphi 0, %s26
      %s40 = sphi 0, %s42
      %s43 = sphi 0, %s40
      %s44 = sphi 0, %s43
      %s60 = sphi 0, %s44
      %s66 = sphi 0, %s68
      %s69 = sphi 0, %s66
      %s70 = sphi 0, %s69
      %s86 = sphi 0, %s70
      %s92 = sphi 0, %s94
      %s95 = sphi 0, %s92
      %s96 = sphi 0, %s95
      %s112 = sphi 0, %s96
      %s118 = sphi 0, %s120
      %s121 = sphi 0, %s118
      %s122 = sphi 0, %s121
      %s138 = sphi 0, %s122
      %s146 = sphi 0, %s148
      %s149 = sphi 0, %s146
      %s150 = sphi 0, %s149
      %s166 = sphi 0, %s150
    $region4: #{tpu_custom_call.1} parent=1 // loop_header_branch
      %19 = sbr.rel (%p17) target = $region8
    $region5: #{tpu_custom_call.1} parent=1 // loop_body
      %s21 = ssub.s32 %s16, 1
      %s22 = ssub.s32 %s16, 2
      %s29 = sadd.s32 1, %s24
      %p30 = scmp.ge.s32.totalorder %s29, 1
      %s31 = scalar_select %p30, 0, %s29
      %s32 = sadd.s32 1, %s23
      %s33 = scalar_select %p30, %s32, %s23
      %p34 = scmp.ge.s32.totalorder %s33, 2
      %s35 = scalar_select %p34, 0, %s33
      %s36 = ssub.s32 %s23, %s35
      %s37 = ssub.s32 %s24, %s31
      %s38 = sor.u32 %s36, %s37
      %p39 = scmp.eq.s32.totalorder %s38, 0
      %s41 = sadd.s32 %s40, 1
      %s42 = scalar_select %p39, %s40, %s41
      %p45 = pneg %p39
      %p46 = scmp.eq.s32.totalorder %s16, 1
      %p47 = por %p45, %p46
      %p48 = scmp.ne.s32.totalorder %s40, %s43
      %p49 = scmp.eq.s32.totalorder %s16, 0
      %p50 = por %p48, %p49
      %p51 = scmp.ne.s32.totalorder %s40, %s43
      %p52 = scmp.eq.s32.totalorder %s21, 1
      %p53 = por %p51, %p52
      %p54 = scmp.ne.s32.totalorder %s43, %s44
      %p55 = scmp.eq.s32.totalorder %s21, 0
      %p56 = por %p54, %p55
      %p57 = scmp.ne.s32.totalorder %s43, %s44
      %p58 = scmp.eq.s32.totalorder %s22, 1
      %p59 = por %p57, %p58
      %p61 = scmp.ne.s32.totalorder %s44, %s60
      %p62 = scmp.eq.s32.totalorder %s22, 0
      %p63 = por %p61, %p62
      %s64 = ssub.s32 %s24, %s31
      %p65 = scmp.eq.s32.totalorder %s64, 0
      %s67 = sadd.s32 %s66, 1
      %s68 = scalar_select %p65, %s66, %s67
      %p71 = pneg %p65
      %p72 = scmp.eq.s32.totalorder %s16, 1
      %p73 = por %p71, %p72
      %p74 = scmp.ne.s32.totalorder %s66, %s69
      %p75 = scmp.eq.s32.totalorder %s16, 0
      %p76 = por %p74, %p75
      %p77 = scmp.ne.s32.totalorder %s66, %s69
      %p78 = scmp.eq.s32.totalorder %s21, 1
      %p79 = por %p77, %p78
      %p80 = scmp.ne.s32.totalorder %s69, %s70
      %p81 = scmp.eq.s32.totalorder %s21, 0
      %p82 = por %p80, %p81
      %p83 = scmp.ne.s32.totalorder %s69, %s70
      %p84 = scmp.eq.s32.totalorder %s22, 1
      %p85 = por %p83, %p84
      %p87 = scmp.ne.s32.totalorder %s70, %s86
      %p88 = scmp.eq.s32.totalorder %s22, 0
      %p89 = por %p87, %p88
      %s90 = ssub.s32 %s24, %s31
      %p91 = scmp.eq.s32.totalorder %s90, 0
      %s93 = sadd.s32 %s92, 1
      %s94 = scalar_select %p91, %s92, %s93
      %p97 = pneg %p91
      %p98 = scmp.eq.s32.totalorder %s16, 1
      %p99 = por %p97, %p98
      %p100 = scmp.ne.s32.totalorder %s92, %s95
      %p101 = scmp.eq.s32.totalorder %s16, 0
      %p102 = por %p100, %p101
      %p103 = scmp.ne.s32.totalorder %s92, %s95
      %p104 = scmp.eq.s32.totalorder %s21, 1
      %p105 = por %p103, %p104
      %p106 = scmp.ne.s32.totalorder %s95, %s96
      %p107 = scmp.eq.s32.totalorder %s21, 0
      %p108 = por %p106, %p107
      %p109 = scmp.ne.s32.totalorder %s95, %s96
      %p110 = scmp.eq.s32.totalorder %s22, 1
      %p111 = por %p109, %p110
      %p113 = scmp.ne.s32.totalorder %s96, %s112
      %p114 = scmp.eq.s32.totalorder %s22, 0
      %p115 = por %p113, %p114
      %s116 = ssub.s32 %s24, %s31
      %p117 = scmp.eq.s32.totalorder %s116, 0
      %s119 = sadd.s32 %s118, 1
      %s120 = scalar_select %p117, %s118, %s119
      %p123 = pneg %p117
      %p124 = scmp.eq.s32.totalorder %s16, 1
      %p125 = por %p123, %p124
      %p126 = scmp.ne.s32.totalorder %s118, %s121
      %p127 = scmp.eq.s32.totalorder %s16, 0
      %p128 = por %p126, %p127
      %p129 = scmp.ne.s32.totalorder %s118, %s121
      %p130 = scmp.eq.s32.totalorder %s21, 1
      %p131 = por %p129, %p130
      %p132 = scmp.ne.s32.totalorder %s121, %s122
      %p133 = scmp.eq.s32.totalorder %s21, 0
      %p134 = por %p132, %p133
      %p135 = scmp.ne.s32.totalorder %s121, %s122
      %p136 = scmp.eq.s32.totalorder %s22, 1
      %p137 = por %p135, %p136
      %p139 = scmp.ne.s32.totalorder %s122, %s138
      %p140 = scmp.eq.s32.totalorder %s22, 0
      %p141 = por %p139, %p140
      %s142 = ssub.s32 %s23, %s35
      %s143 = ssub.s32 %s24, %s31
      %s144 = sor.u32 %s142, %s143
      %p145 = scmp.eq.s32.totalorder %s144, 0
      %s147 = sadd.s32 %s146, 1
      %s148 = scalar_select %p145, %s146, %s147
      %p151 = pneg %p145
      %p152 = scmp.eq.s32.totalorder %s16, 1
      %p153 = por %p151, %p152
      %p154 = scmp.ne.s32.totalorder %s146, %s149
      %p155 = scmp.eq.s32.totalorder %s16, 0
      %p156 = por %p154, %p155
      %p157 = scmp.ne.s32.totalorder %s146, %s149
      %p158 = scmp.eq.s32.totalorder %s21, 1
      %p159 = por %p157, %p158
      %p160 = scmp.ne.s32.totalorder %s149, %s150
      %p161 = scmp.eq.s32.totalorder %s21, 0
      %p162 = por %p160, %p161
      %p163 = scmp.ne.s32.totalorder %s149, %s150
      %p164 = scmp.eq.s32.totalorder %s22, 1
      %p165 = por %p163, %p164
      %p167 = scmp.ne.s32.totalorder %s150, %s166
      %p168 = scmp.eq.s32.totalorder %s22, 0
      %p169 = por %p167, %p168
      %p170 = scmp.le.s32.totalorder 1, %s16
      %p171 = scmp.lt.s32.totalorder %s16, 3
      %p172 = pnand %p170, %p171
      %p173 = pneg %p172
      // Predicated region
      $region9: #{tpu_custom_call.1} parent=5 // pred_check
        _
      $region10: #{tpu_custom_call.1} parent=5 // pred_check_branch
        %175 = sbr.rel (%p172) target = $region12
      $region11: #{tpu_custom_call.1} parent=5 // pred_region
        %s176 = ssub.s32 %s16, 1
        // Predicated region
        $region13: #{tpu_custom_call.1} parent=11 // pred_check
          %p177 = pneg %p82
        $region14: #{tpu_custom_call.1} parent=11 // pred_check_branch
          %179 = sbr.rel (%p177) target = $region16
        $region15: #{tpu_custom_call.1} parent=11 // pred_region
          %s180 = smul.u32 4, %s26
          %p181 = scmp.lt.s32.totalorder %s180, 3
          %s182 = scalar_select %p181, %s180, 3
          %s183 = scalar_lea.vmem %s1, %s182
          %s184 = smul.u32 4, %s26
        $region16: #{tpu_custom_call.1} parent=11 // pred_fallthru
          _
        // Predicated region
        $region17: #{tpu_custom_call.1} parent=11 // pred_check
          %p185 = pneg %p108
        $region18: #{tpu_custom_call.1} parent=11 // pred_check_branch
          %187 = sbr.rel (%p185) target = $region20
        $region19: #{tpu_custom_call.1} parent=11 // pred_region
          %s188 = smul.u32 4, %s26
          %p189 = scmp.lt.s32.totalorder %s188, 3
          %s190 = scalar_select %p189, %s188, 3
          %s191 = scalar_lea.vmem %s2, %s190
          %s192 = smul.u32 4, %s26
        $region20: #{tpu_custom_call.1} parent=11 // pred_fallthru
          _
        // Predicated region
        $region21: #{tpu_custom_call.1} parent=11 // pred_check
          %p193 = pneg %p134
        $region22: #{tpu_custom_call.1} parent=11 // pred_check_branch
          %195 = sbr.rel (%p193) target = $region24
        $region23: #{tpu_custom_call.1} parent=11 // pred_region
          %s196 = smul.u32 4, %s26
          %p197 = scmp.lt.s32.totalorder %s196, 3
          %s198 = scalar_select %p197, %s196, 3
          %s199 = scalar_lea.vmem %s3, %s198
          %s200 = smul.u32 4, %s26
        $region24: #{tpu_custom_call.1} parent=11 // pred_fallthru
          _
      $region12: #{tpu_custom_call.1} parent=5 // pred_fallthru
        _
      %p201 = scmp.lt.s32.totalorder %s16, 2
      // Predicated region
      $region25: #{tpu_custom_call.1} parent=5 // pred_check
        %p202 = pneg %p201
      $region26: #{tpu_custom_call.1} parent=5 // pred_check_branch
        %204 = sbr.rel (%p202) target = $region28
      $region27: #{tpu_custom_call.1} parent=5 // pred_region
        // Predicated region
        $region29: #{tpu_custom_call.1} parent=27 // pred_check
          %p205 = pneg %p50
        $region30: #{tpu_custom_call.1} parent=27 // pred_check_branch
          %207 = sbr.rel (%p205) target = $region32
        $region31: #{tpu_custom_call.1} parent=27 // pred_region
          %s208 = sand.u32 %s40, 1
          %s209 = scalar_lea.sflag [#allocation4], %s208
          %s210 = sand.u32 %s40, 1
          %s211 = smul.addr %s210, 64
          %s212 = scalar_lea.vmem [#allocation3], %s211
          %s213 = smul.u32 4, %s24
          %s215 = ssub.s32 1024, 1024
          %216 = vsyncadd %s209, %s215
          %s217 = smul.addr %s213, 2
          %s218 = smul.addr %s23, 8
          %s219 = sadd.s32 %s217, %s218
          %s220 = smul.addr %s219, 128
          %s221 = scalar_lea.hbm %s0, %s220
          %s222 = sshll.u32 %s212, 4
          %s223 = int_to_ptr.vmem [resolvable:$true] %s222
          %228 = dma.hbm_to_vmem [thread:$0]  %s221, 1024, %s223, %s209, 128, 128, 8
        $region32: #{tpu_custom_call.1} parent=27 // pred_fallthru
          _
      $region28: #{tpu_custom_call.1} parent=5 // pred_fallthru
        _
      %p229 = scmp.le.s32.totalorder 1, %s16
      %p230 = scmp.lt.s32.totalorder %s16, 3
      %p231 = pnand %p229, %p230
      %p232 = pneg %p231
      // Predicated region
      $region33: #{tpu_custom_call.1} parent=5 // pred_check
        _
      $region34: #{tpu_custom_call.1} parent=5 // pred_check_branch
        %234 = sbr.rel (%p231) target = $region36
      $region35: #{tpu_custom_call.1} parent=5 // pred_region
        %s235 = ssub.s32 %s16, 1
        %s236 = sand.u32 %s43, 1
        %s237 = scalar_lea.sflag [#allocation4], %s236
        %s238 = sand.u32 %s43, 1
        %s239 = smul.addr %s238, 64
        %s240 = scalar_lea.vmem [#allocation3], %s239
        // Predicated region
        $region37: #{tpu_custom_call.1} parent=35 // pred_check
          %p241 = pneg %p56
        $region38: #{tpu_custom_call.1} parent=35 // pred_check_branch
          %243 = sbr.rel (%p241) target = $region40
        $region39: #{tpu_custom_call.1} parent=35 // pred_region
          %244 = dma.done %s237, 1024
        $region40: #{tpu_custom_call.1} parent=35 // pred_fallthru
          _
        %s245 = sand.u32 %s43, 1
        %s246 = scalar_lea.sflag [#allocation4], %s245
        %s247 = sand.u32 %s43, 1
        %s248 = smul.addr %s247, 64
        %s249 = scalar_lea.vmem [#allocation3], %s248
        %p250 = pneg %p56
        %p251 = pneg %p53
        %s252 = smul.u32 4, %s26
        %p253 = scmp.lt.s32.totalorder %s252, 3
        %s254 = scalar_select %p253, %s252, 3
        %s255 = scalar_lea.vmem %s1, %s254
        %p256 = pneg %p82
        %p257 = pneg %p79
        %s258 = smul.u32 4, %s26
        %p259 = scmp.lt.s32.totalorder %s258, 3
        %s260 = scalar_select %p259, %s258, 3
        %s261 = scalar_lea.vmem %s2, %s260
        %p262 = pneg %p108
        %p263 = pneg %p105
        %s264 = smul.u32 4, %s26
        %p265 = scmp.lt.s32.totalorder %s264, 3
        %s266 = scalar_select %p265, %s264, 3
        %s267 = scalar_lea.vmem %s3, %s266
        %p268 = pneg %p134
        %p269 = pneg %p131
        %p270 = pneg %p162
        %p271 = pneg %p159
        %s272 = sand.u32 %s149, 1
        %s273 = scalar_lea.sflag [#allocation5], %s272
        %s274 = sand.u32 %s149, 1
        %s275 = smul.addr %s274, 64
        %s276 = scalar_lea.vmem [#allocation6], %s275
        %s277 = smul.u32 4, %s26
        %s278 = smul.u32 4, %s26
        %p279 = scmp.lt.s32.totalorder %s278, 3
        %s280 = scalar_select %p279, %s278, 3
        %s281 = scalar_lea.vmem %s1, %s280
        %s282 = smul.u32 4, %s26
        %s283 = smul.u32 4, %s26
        %p284 = scmp.lt.s32.totalorder %s283, 3
        %s285 = scalar_select %p284, %s283, 3
        %s286 = scalar_lea.vmem %s2, %s285
        %s287 = smul.u32 4, %s26
        %s288 = smul.u32 4, %s26
        %p289 = scmp.lt.s32.totalorder %s288, 3
        %s290 = scalar_select %p289, %s288, 3
        %s291 = scalar_lea.vmem %s3, %s290
        %s292 = smul.u32 4, %s26
        %s293 = smul.u32 4, %s26
        %v294 = vld [vmem:[%s286] sm:$0x1]
        %v295 = vld [vmem:[%s286 + $0x1] sm:$0x1]
        %v296 = vld [vmem:[%s286 + $0x2] sm:$0x1]
        %v297 = vld [vmem:[%s286 + $0x3] sm:$0x1]
        %v298 = vmul.f32 %v294, 10.0
        %v299 = vmul.f32 %v295, 10.0
        %v300 = vmul.f32 %v296, 10.0
        %v301 = vmul.f32 %v297, 10.0
        %v306 = vlaneseq
        %v307 = vshrl.u32 %v306, 7
        %v308 = vsub.s32 0, %v307
        %v309 = vrot.slane %v298, %v308
        %v310 = vlaneseq
        %v311 = vshrl.u32 %v310, 7
        %v312 = vsub.s32 0, %v311
        %v313 = vrot.slane %v299, %v312
        %v314 = vlaneseq
        %v315 = vshrl.u32 %v314, 7
        %v316 = vsub.s32 0, %v315
        %v317 = vrot.slane %v300, %v316
        %v318 = vlaneseq
        %v319 = vshrl.u32 %v318, 7
        %v320 = vsub.s32 0, %v319
        %v321 = vrot.slane %v301, %v320
        %322 = vset.pattern.permute.xlu0 0
        %323 = vperm.xlu0 %322, %v309
        %v324 = vpop.permute.xlu0 %323
        %326 = vset.pattern.permute.xlu0 0
        %327 = vperm.xlu0 %326, %v313
        %v328 = vpop.permute.xlu0 %327
        %330 = vset.pattern.permute.xlu0 0
        %331 = vperm.xlu0 %330, %v317
        %v332 = vpop.permute.xlu0 %331
        %334 = vset.pattern.permute.xlu0 0
        %335 = vperm.xlu0 %334, %v321
        %v336 = vpop.permute.xlu0 %335
        %vm338 = vcmask 146432
        %339 = vst.msk [vmem:[#allocation2] sm:$0xff] %vm338, %v324
        %340 = vst.msk [vmem:[#allocation2 + $0x8] sm:$0xff] %vm338, %v324
        %vm341 = vcmask 140288
        %342 = vst.msk [vmem:[#allocation2 + $0x10] sm:$0x3] %vm341, %v324
        %343 = vst.msk [vmem:[#allocation2 + $0x18] sm:$0xff] %vm338, %v328
        %344 = vst.msk [vmem:[#allocation2 + $0x20] sm:$0xff] %vm338, %v328
        %345 = vst.msk [vmem:[#allocation2 + $0x28] sm:$0x3] %vm341, %v328
        %346 = vst.msk [vmem:[#allocation2 + $0x30] sm:$0xff] %vm338, %v332
        %347 = vst.msk [vmem:[#allocation2 + $0x38] sm:$0xff] %vm338, %v332
        %348 = vst.msk [vmem:[#allocation2 + $0x40] sm:$0x3] %vm341, %v332
        %349 = vst.msk [vmem:[#allocation2 + $0x48] sm:$0xff] %vm338, %v336
        %350 = vst.msk [vmem:[#allocation2 + $0x50] sm:$0xff] %vm338, %v336
        %351 = vst.msk [vmem:[#allocation2 + $0x58] sm:$0x3] %vm341, %v336
        %v352 = vld [vmem:[%s240] sm:$0xff]
        %v353 = vld [vmem:[%s240 + $0x8] sm:$0xff]
        %v354 = vld [vmem:[%s240 + $0x10] sm:$0xff]
        %v355 = vld [vmem:[%s240 + $0x18] sm:$0xff]
        %v356 = vld [vmem:[%s240 + $0x20] sm:$0xff]
        %v357 = vld [vmem:[%s240 + $0x28] sm:$0xff]
        %v358 = vld [vmem:[%s240 + $0x30] sm:$0xff]
        %v359 = vld [vmem:[%s240 + $0x38] sm:$0xff]
        %v360 = vadd.f32 %v352, %v324
        %v361 = vadd.f32 %v353, %v324
        %v362 = vadd.f32 %v354, %v328
        %v363 = vadd.f32 %v355, %v328
        %v364 = vadd.f32 %v356, %v332
        %v365 = vadd.f32 %v357, %v332
        %v366 = vadd.f32 %v358, %v336
        %v367 = vadd.f32 %v359, %v336
        %376 = vrot.lane.b32.xlu0 %v360, 1
        %v377 = vpop.permute.xlu0 %376
        %378 = vrot.lane.b32.xlu0 %v361, 1
        %v379 = vpop.permute.xlu0 %378
        %380 = vrot.lane.b32.xlu0 %v362, 1
        %v381 = vpop.permute.xlu0 %380
        %382 = vrot.lane.b32.xlu0 %v363, 1
        %v383 = vpop.permute.xlu0 %382
        %384 = vrot.lane.b32.xlu0 %v364, 1
        %v385 = vpop.permute.xlu0 %384
        %386 = vrot.lane.b32.xlu0 %v365, 1
        %v387 = vpop.permute.xlu0 %386
        %388 = vrot.lane.b32.xlu0 %v366, 1
        %v389 = vpop.permute.xlu0 %388
        %390 = vrot.lane.b32.xlu0 %v367, 1
        %v391 = vpop.permute.xlu0 %390
        %vm400 = vcmask 138248
        %401 = vst.msk [vmem:[#allocation2 + $0x1] sm:$0xff] %vm400, %v377
        %402 = vst.msk [vmem:[#allocation2 + $0x9] sm:$0xff] %vm400, %v379
        %403 = vst.msk [vmem:[#allocation2 + $0x19] sm:$0xff] %vm400, %v381
        %404 = vst.msk [vmem:[#allocation2 + $0x21] sm:$0xff] %vm400, %v383
        %405 = vst.msk [vmem:[#allocation2 + $0x31] sm:$0xff] %vm400, %v385
        %406 = vst.msk [vmem:[#allocation2 + $0x39] sm:$0xff] %vm400, %v387
        %407 = vst.msk [vmem:[#allocation2 + $0x49] sm:$0xff] %vm400, %v389
        %408 = vst.msk [vmem:[#allocation2 + $0x51] sm:$0xff] %vm400, %v391
        %v409 = vld [vmem:[#allocation2] sm:$0xff]
        %v410 = vld [vmem:[#allocation2 + $0x8] sm:$0xff]
        %v411 = vld [vmem:[#allocation2 + $0x10] sm:$0x3]
        %v412 = vld [vmem:[#allocation2 + $0x18] sm:$0xff]
        %v413 = vld [vmem:[#allocation2 + $0x20] sm:$0xff]
        %v414 = vld [vmem:[#allocation2 + $0x28] sm:$0x3]
        %v415 = vld [vmem:[#allocation2 + $0x30] sm:$0xff]
        %v416 = vld [vmem:[#allocation2 + $0x38] sm:$0xff]
        %v417 = vld [vmem:[#allocation2 + $0x40] sm:$0x3]
        %v418 = vld [vmem:[#allocation2 + $0x48] sm:$0xff]
        %v419 = vld [vmem:[#allocation2 + $0x50] sm:$0xff]
        %v420 = vld [vmem:[#allocation2 + $0x58] sm:$0x3]
        %v421 = vld [vmem:[%s281] sm:$0x1]
        %v422 = vld [vmem:[%s281 + $0x1] sm:$0x1]
        %v423 = vld [vmem:[%s281 + $0x2] sm:$0x1]
        %v424 = vld [vmem:[%s281 + $0x3] sm:$0x1]
        %v429 = vlaneseq
        %v430 = vshrl.u32 %v429, 7
        %v431 = vsub.s32 0, %v430
        %v432 = vrot.slane %v421, %v431
        %v433 = vlaneseq
        %v434 = vshrl.u32 %v433, 7
        %v435 = vsub.s32 0, %v434
        %v436 = vrot.slane %v422, %v435
        %v437 = vlaneseq
        %v438 = vshrl.u32 %v437, 7
        %v439 = vsub.s32 0, %v438
        %v440 = vrot.slane %v423, %v439
        %v441 = vlaneseq
        %v442 = vshrl.u32 %v441, 7
        %v443 = vsub.s32 0, %v442
        %v444 = vrot.slane %v424, %v443
        %445 = vset.pattern.permute.xlu0 0
        %446 = vperm.xlu0 %445, %v432
        %v447 = vpop.permute.xlu0 %446
        %449 = vset.pattern.permute.xlu0 0
        %450 = vperm.xlu0 %449, %v436
        %v451 = vpop.permute.xlu0 %450
        %453 = vset.pattern.permute.xlu0 0
        %454 = vperm.xlu0 %453, %v440
        %v455 = vpop.permute.xlu0 %454
        %457 = vset.pattern.permute.xlu0 0
        %458 = vperm.xlu0 %457, %v444
        %v459 = vpop.permute.xlu0 %458
        %v461 = vmul.f32 %v409, %v447
        %v462 = vmul.f32 %v410, %v447
        %v463 = vmul.f32 %v412, %v451
        %v464 = vmul.f32 %v413, %v451
        %v465 = vmul.f32 %v415, %v455
        %v466 = vmul.f32 %v416, %v455
        %v467 = vmul.f32 %v418, %v459
        %v468 = vmul.f32 %v419, %v459
        %s469 = scalar_lea.vmem %s281, 4
        %v470 = vld [vmem:[%s469] sm:$0x1]
        %v471 = vld [vmem:[%s469 + $0x1] sm:$0x1]
        %v472 = vld [vmem:[%s469 + $0x2] sm:$0x1]
        %v473 = vld [vmem:[%s469 + $0x3] sm:$0x1]
        %v478 = vlaneseq
        %v479 = vshrl.u32 %v478, 7
        %v480 = vsub.s32 0, %v479
        %v481 = vrot.slane %v470, %v480
        %v482 = vlaneseq
        %v483 = vshrl.u32 %v482, 7
        %v484 = vsub.s32 0, %v483
        %v485 = vrot.slane %v471, %v484
        %v486 = vlaneseq
        %v487 = vshrl.u32 %v486, 7
        %v488 = vsub.s32 0, %v487
        %v489 = vrot.slane %v472, %v488
        %v490 = vlaneseq
        %v491 = vshrl.u32 %v490, 7
        %v492 = vsub.s32 0, %v491
        %v493 = vrot.slane %v473, %v492
        %494 = vset.pattern.permute.xlu0 0
        %495 = vperm.xlu0 %494, %v481
        %v496 = vpop.permute.xlu0 %495
        %498 = vset.pattern.permute.xlu0 0
        %499 = vperm.xlu0 %498, %v485
        %v500 = vpop.permute.xlu0 %499
        %502 = vset.pattern.permute.xlu0 0
        %503 = vperm.xlu0 %502, %v489
        %v504 = vpop.permute.xlu0 %503
        %506 = vset.pattern.permute.xlu0 0
        %507 = vperm.xlu0 %506, %v493
        %v508 = vpop.permute.xlu0 %507
        %v510 = vmul.f32 %v409, %v496
        %v511 = vmul.f32 %v410, %v496
        %v512 = vmul.f32 %v412, %v500
        %v513 = vmul.f32 %v413, %v500
        %v514 = vmul.f32 %v415, %v504
        %v515 = vmul.f32 %v416, %v504
        %v516 = vmul.f32 %v418, %v508
        %v517 = vmul.f32 %v419, %v508
        %526 = vrot.lane.b32.xlu0 %v510, 127
        %v527 = vpop.permute.xlu0 %526
        %528 = vrot.lane.b32.xlu0 %v511, 127
        %v529 = vpop.permute.xlu0 %528
        %530 = vrot.lane.b32.xlu0 %v512, 127
        %v531 = vpop.permute.xlu0 %530
        %532 = vrot.lane.b32.xlu0 %v513, 127
        %v533 = vpop.permute.xlu0 %532
        %534 = vrot.lane.b32.xlu0 %v514, 127
        %v535 = vpop.permute.xlu0 %534
        %536 = vrot.lane.b32.xlu0 %v515, 127
        %v537 = vpop.permute.xlu0 %536
        %538 = vrot.lane.b32.xlu0 %v516, 127
        %v539 = vpop.permute.xlu0 %538
        %540 = vrot.lane.b32.xlu0 %v517, 127
        %v541 = vpop.permute.xlu0 %540
        %v550 = vmax.f32 %v461, %v527
        %v551 = vmax.f32 %v462, %v529
        %v552 = vmax.f32 %v463, %v531
        %v553 = vmax.f32 %v464, %v533
        %v554 = vmax.f32 %v465, %v535
        %v555 = vmax.f32 %v466, %v537
        %v556 = vmax.f32 %v467, %v539
        %v557 = vmax.f32 %v468, %v541
        %v558 = vmin.f32 %v461, %v527
        %v559 = vmin.f32 %v462, %v529
        %v560 = vmin.f32 %v463, %v531
        %v561 = vmin.f32 %v464, %v533
        %v562 = vmin.f32 %v465, %v535
        %v563 = vmin.f32 %v466, %v537
        %v564 = vmin.f32 %v467, %v539
        %v565 = vmin.f32 %v468, %v541
        %s566 = scalar_lea.vmem %s281, 8
        %v567 = vld [vmem:[%s566] sm:$0x1]
        %v568 = vld [vmem:[%s566 + $0x1] sm:$0x1]
        %v569 = vld [vmem:[%s566 + $0x2] sm:$0x1]
        %v570 = vld [vmem:[%s566 + $0x3] sm:$0x1]
        %v575 = vlaneseq
        %v576 = vshrl.u32 %v575, 7
        %v577 = vsub.s32 0, %v576
        %v578 = vrot.slane %v567, %v577
        %v579 = vlaneseq
        %v580 = vshrl.u32 %v579, 7
        %v581 = vsub.s32 0, %v580
        %v582 = vrot.slane %v568, %v581
        %v583 = vlaneseq
        %v584 = vshrl.u32 %v583, 7
        %v585 = vsub.s32 0, %v584
        %v586 = vrot.slane %v569, %v585
        %v587 = vlaneseq
        %v588 = vshrl.u32 %v587, 7
        %v589 = vsub.s32 0, %v588
        %v590 = vrot.slane %v570, %v589
        %591 = vset.pattern.permute.xlu0 0
        %592 = vperm.xlu0 %591, %v578
        %v593 = vpop.permute.xlu0 %592
        %595 = vset.pattern.permute.xlu0 0
        %596 = vperm.xlu0 %595, %v582
        %v597 = vpop.permute.xlu0 %596
        %599 = vset.pattern.permute.xlu0 0
        %600 = vperm.xlu0 %599, %v586
        %v601 = vpop.permute.xlu0 %600
        %603 = vset.pattern.permute.xlu0 0
        %604 = vperm.xlu0 %603, %v590
        %v605 = vpop.permute.xlu0 %604
        %v607 = vmul.f32 %v409, %v593
        %v608 = vmul.f32 %v410, %v593
        %v609 = vmul.f32 %v412, %v597
        %v610 = vmul.f32 %v413, %v597
        %v611 = vmul.f32 %v415, %v601
        %v612 = vmul.f32 %v416, %v601
        %v613 = vmul.f32 %v418, %v605
        %v614 = vmul.f32 %v419, %v605
        %623 = vrot.lane.b32.xlu0 %v607, 126
        %v624 = vpop.permute.xlu0 %623
        %625 = vrot.lane.b32.xlu0 %v608, 126
        %v626 = vpop.permute.xlu0 %625
        %627 = vrot.lane.b32.xlu0 %v609, 126
        %v628 = vpop.permute.xlu0 %627
        %629 = vrot.lane.b32.xlu0 %v610, 126
        %v630 = vpop.permute.xlu0 %629
        %631 = vrot.lane.b32.xlu0 %v611, 126
        %v632 = vpop.permute.xlu0 %631
        %633 = vrot.lane.b32.xlu0 %v612, 126
        %v634 = vpop.permute.xlu0 %633
        %635 = vrot.lane.b32.xlu0 %v613, 126
        %v636 = vpop.permute.xlu0 %635
        %637 = vrot.lane.b32.xlu0 %v614, 126
        %v638 = vpop.permute.xlu0 %637
        %v647 = vmax.f32 %v550, %v624
        %v648 = vmax.f32 %v551, %v626
        %v649 = vmax.f32 %v552, %v628
        %v650 = vmax.f32 %v553, %v630
        %v651 = vmax.f32 %v554, %v632
        %v652 = vmax.f32 %v555, %v634
        %v653 = vmax.f32 %v556, %v636
        %v654 = vmax.f32 %v557, %v638
        %v655 = vmin.f32 %v558, %v624
        %v656 = vmin.f32 %v559, %v626
        %v657 = vmin.f32 %v560, %v628
        %v658 = vmin.f32 %v561, %v630
        %v659 = vmin.f32 %v562, %v632
        %v660 = vmin.f32 %v563, %v634
        %v661 = vmin.f32 %v564, %v636
        %v662 = vmin.f32 %v565, %v638
        %s663 = scalar_lea.vmem %s281, 12
        %v664 = vld [vmem:[%s663] sm:$0x1]
        %v665 = vld [vmem:[%s663 + $0x1] sm:$0x1]
        %v666 = vld [vmem:[%s663 + $0x2] sm:$0x1]
        %v667 = vld [vmem:[%s663 + $0x3] sm:$0x1]
        %v672 = vlaneseq
        %v673 = vshrl.u32 %v672, 7
        %v674 = vsub.s32 0, %v673
        %v675 = vrot.slane %v664, %v674
        %v676 = vlaneseq
        %v677 = vshrl.u32 %v676, 7
        %v678 = vsub.s32 0, %v677
        %v679 = vrot.slane %v665, %v678
        %v680 = vlaneseq
        %v681 = vshrl.u32 %v680, 7
        %v682 = vsub.s32 0, %v681
        %v683 = vrot.slane %v666, %v682
        %v684 = vlaneseq
        %v685 = vshrl.u32 %v684, 7
        %v686 = vsub.s32 0, %v685
        %v687 = vrot.slane %v667, %v686
        %688 = vset.pattern.permute.xlu0 0
        %689 = vperm.xlu0 %688, %v675
        %v690 = vpop.permute.xlu0 %689
        %692 = vset.pattern.permute.xlu0 0
        %693 = vperm.xlu0 %692, %v679
        %v694 = vpop.permute.xlu0 %693
        %696 = vset.pattern.permute.xlu0 0
        %697 = vperm.xlu0 %696, %v683
        %v698 = vpop.permute.xlu0 %697
        %700 = vset.pattern.permute.xlu0 0
        %701 = vperm.xlu0 %700, %v687
        %v702 = vpop.permute.xlu0 %701
        %v704 = vmul.f32 %v409, %v690
        %v705 = vmul.f32 %v410, %v690
        %v706 = vmul.f32 %v411, %v690
        %v707 = vmul.f32 %v412, %v694
        %v708 = vmul.f32 %v413, %v694
        %v709 = vmul.f32 %v414, %v694
        %v710 = vmul.f32 %v415, %v698
        %v711 = vmul.f32 %v416, %v698
        %v712 = vmul.f32 %v417, %v698
        %v713 = vmul.f32 %v418, %v702
        %v714 = vmul.f32 %v419, %v702
        %v715 = vmul.f32 %v420, %v702
        %vm728 = vcmask 1046528
        %v729 = vrot.slane %v704, 1
        %v730 = vrot.slane %v705, 1
        %v731 = vsel %vm728, %v729, %v730
        %v732 = vrot.slane %v706, 1
        %v733 = vsel %vm728, %v730, %v732
        %v734 = vrot.slane %v707, 1
        %v735 = vrot.slane %v708, 1
        %v736 = vsel %vm728, %v734, %v735
        %v737 = vrot.slane %v709, 1
        %v738 = vsel %vm728, %v735, %v737
        %v739 = vrot.slane %v710, 1
        %v740 = vrot.slane %v711, 1
        %v741 = vsel %vm728, %v739, %v740
        %v742 = vrot.slane %v712, 1
        %v743 = vsel %vm728, %v740, %v742
        %v744 = vrot.slane %v713, 1
        %v745 = vrot.slane %v714, 1
        %v746 = vsel %vm728, %v744, %v745
        %v747 = vrot.slane %v715, 1
        %v748 = vsel %vm728, %v745, %v747
        %v757 = vmax.f32 %v647, %v731
        %v758 = vmax.f32 %v648, %v733
        %v759 = vmax.f32 %v649, %v736
        %v760 = vmax.f32 %v650, %v738
        %v761 = vmax.f32 %v651, %v741
        %v762 = vmax.f32 %v652, %v743
        %v763 = vmax.f32 %v653, %v746
        %v764 = vmax.f32 %v654, %v748
        %v765 = vmin.f32 %v655, %v731
        %v766 = vmin.f32 %v656, %v733
        %v767 = vmin.f32 %v657, %v736
        %v768 = vmin.f32 %v658, %v738
        %v769 = vmin.f32 %v659, %v741
        %v770 = vmin.f32 %v660, %v743
        %v771 = vmin.f32 %v661, %v746
        %v772 = vmin.f32 %v662, %v748
        %s773 = scalar_lea.vmem %s281, 16
        %v774 = vld [vmem:[%s773] sm:$0x1]
        %v775 = vld [vmem:[%s773 + $0x1] sm:$0x1]
        %v776 = vld [vmem:[%s773 + $0x2] sm:$0x1]
        %v777 = vld [vmem:[%s773 + $0x3] sm:$0x1]
        %v782 = vlaneseq
        %v783 = vshrl.u32 %v782, 7
        %v784 = vsub.s32 0, %v783
        %v785 = vrot.slane %v774, %v784
        %v786 = vlaneseq
        %v787 = vshrl.u32 %v786, 7
        %v788 = vsub.s32 0, %v787
        %v789 = vrot.slane %v775, %v788
        %v790 = vlaneseq
        %v791 = vshrl.u32 %v790, 7
        %v792 = vsub.s32 0, %v791
        %v793 = vrot.slane %v776, %v792
        %v794 = vlaneseq
        %v795 = vshrl.u32 %v794, 7
        %v796 = vsub.s32 0, %v795
        %v797 = vrot.slane %v777, %v796
        %798 = vset.pattern.permute.xlu0 0
        %799 = vperm.xlu0 %798, %v785
        %v800 = vpop.permute.xlu0 %799
        %802 = vset.pattern.permute.xlu0 0
        %803 = vperm.xlu0 %802, %v789
        %v804 = vpop.permute.xlu0 %803
        %806 = vset.pattern.permute.xlu0 0
        %807 = vperm.xlu0 %806, %v793
        %v808 = vpop.permute.xlu0 %807
        %810 = vset.pattern.permute.xlu0 0
        %811 = vperm.xlu0 %810, %v797
        %v812 = vpop.permute.xlu0 %811
        %v814 = vmul.f32 %v409, %v800
        %v815 = vmul.f32 %v410, %v800
        %v816 = vmul.f32 %v411, %v800
        %v817 = vmul.f32 %v412, %v804
        %v818 = vmul.f32 %v413, %v804
        %v819 = vmul.f32 %v414, %v804
        %v820 = vmul.f32 %v415, %v808
        %v821 = vmul.f32 %v416, %v808
        %v822 = vmul.f32 %v417, %v808
        %v823 = vmul.f32 %v418, %v812
        %v824 = vmul.f32 %v419, %v812
        %v825 = vmul.f32 %v420, %v812
        %v838 = vrot.slane %v814, 1
        %v839 = vrot.slane %v815, 1
        %v840 = vsel %vm728, %v838, %v839
        %v841 = vrot.slane %v816, 1
        %v842 = vsel %vm728, %v839, %v841
        %v843 = vrot.slane %v817, 1
        %v844 = vrot.slane %v818, 1
        %v845 = vsel %vm728, %v843, %v844
        %v846 = vrot.slane %v819, 1
        %v847 = vsel %vm728, %v844, %v846
        %v848 = vrot.slane %v820, 1
        %v849 = vrot.slane %v821, 1
        %v850 = vsel %vm728, %v848, %v849
        %v851 = vrot.slane %v822, 1
        %v852 = vsel %vm728, %v849, %v851
        %v853 = vrot.slane %v823, 1
        %v854 = vrot.slane %v824, 1
        %v855 = vsel %vm728, %v853, %v854
        %v856 = vrot.slane %v825, 1
        %v857 = vsel %vm728, %v854, %v856
        %858 = vrot.lane.b32.xlu0 %v840, 127
        %v859 = vpop.permute.xlu0 %858
        %860 = vrot.lane.b32.xlu0 %v842, 127
        %v861 = vpop.permute.xlu0 %860
        %862 = vrot.lane.b32.xlu0 %v845, 127
        %v863 = vpop.permute.xlu0 %862
        %864 = vrot.lane.b32.xlu0 %v847, 127
        %v865 = vpop.permute.xlu0 %864
        %866 = vrot.lane.b32.xlu0 %v850, 127
        %v867 = vpop.permute.xlu0 %866
        %868 = vrot.lane.b32.xlu0 %v852, 127
        %v869 = vpop.permute.xlu0 %868
        %870 = vrot.lane.b32.xlu0 %v855, 127
        %v871 = vpop.permute.xlu0 %870
        %872 = vrot.lane.b32.xlu0 %v857, 127
        %v873 = vpop.permute.xlu0 %872
        %v882 = vmax.f32 %v757, %v859
        %v883 = vmax.f32 %v758, %v861
        %v884 = vmax.f32 %v759, %v863
        %v885 = vmax.f32 %v760, %v865
        %v886 = vmax.f32 %v761, %v867
        %v887 = vmax.f32 %v762, %v869
        %v888 = vmax.f32 %v763, %v871
        %v889 = vmax.f32 %v764, %v873
        %v890 = vmin.f32 %v765, %v859
        %v891 = vmin.f32 %v766, %v861
        %v892 = vmin.f32 %v767, %v863
        %v893 = vmin.f32 %v768, %v865
        %v894 = vmin.f32 %v769, %v867
        %v895 = vmin.f32 %v770, %v869
        %v896 = vmin.f32 %v771, %v871
        %v897 = vmin.f32 %v772, %v873
        %s898 = scalar_lea.vmem %s281, 20
        %v899 = vld [vmem:[%s898] sm:$0x1]
        %v900 = vld [vmem:[%s898 + $0x1] sm:$0x1]
        %v901 = vld [vmem:[%s898 + $0x2] sm:$0x1]
        %v902 = vld [vmem:[%s898 + $0x3] sm:$0x1]
        %v907 = vlaneseq
        %v908 = vshrl.u32 %v907, 7
        %v909 = vsub.s32 0, %v908
        %v910 = vrot.slane %v899, %v909
        %v911 = vlaneseq
        %v912 = vshrl.u32 %v911, 7
        %v913 = vsub.s32 0, %v912
        %v914 = vrot.slane %v900, %v913
        %v915 = vlaneseq
        %v916 = vshrl.u32 %v915, 7
        %v917 = vsub.s32 0, %v916
        %v918 = vrot.slane %v901, %v917
        %v919 = vlaneseq
        %v920 = vshrl.u32 %v919, 7
        %v921 = vsub.s32 0, %v920
        %v922 = vrot.slane %v902, %v921
        %923 = vset.pattern.permute.xlu0 0
        %924 = vperm.xlu0 %923, %v910
        %v925 = vpop.permute.xlu0 %924
        %927 = vset.pattern.permute.xlu0 0
        %928 = vperm.xlu0 %927, %v914
        %v929 = vpop.permute.xlu0 %928
        %931 = vset.pattern.permute.xlu0 0
        %932 = vperm.xlu0 %931, %v918
        %v933 = vpop.permute.xlu0 %932
        %935 = vset.pattern.permute.xlu0 0
        %936 = vperm.xlu0 %935, %v922
        %v937 = vpop.permute.xlu0 %936
        %v939 = vmul.f32 %v409, %v925
        %v940 = vmul.f32 %v410, %v925
        %v941 = vmul.f32 %v411, %v925
        %v942 = vmul.f32 %v412, %v929
        %v943 = vmul.f32 %v413, %v929
        %v944 = vmul.f32 %v414, %v929
        %v945 = vmul.f32 %v415, %v933
        %v946 = vmul.f32 %v416, %v933
        %v947 = vmul.f32 %v417, %v933
        %v948 = vmul.f32 %v418, %v937
        %v949 = vmul.f32 %v419, %v937
        %v950 = vmul.f32 %v420, %v937
        %v963 = vrot.slane %v939, 1
        %v964 = vrot.slane %v940, 1
        %v965 = vsel %vm728, %v963, %v964
        %v966 = vrot.slane %v941, 1
        %v967 = vsel %vm728, %v964, %v966
        %v968 = vrot.slane %v942, 1
        %v969 = vrot.slane %v943, 1
        %v970 = vsel %vm728, %v968, %v969
        %v971 = vrot.slane %v944, 1
        %v972 = vsel %vm728, %v969, %v971
        %v973 = vrot.slane %v945, 1
        %v974 = vrot.slane %v946, 1
        %v975 = vsel %vm728, %v973, %v974
        %v976 = vrot.slane %v947, 1
        %v977 = vsel %vm728, %v974, %v976
        %v978 = vrot.slane %v948, 1
        %v979 = vrot.slane %v949, 1
        %v980 = vsel %vm728, %v978, %v979
        %v981 = vrot.slane %v950, 1
        %v982 = vsel %vm728, %v979, %v981
        %983 = vrot.lane.b32.xlu0 %v965, 126
        %v984 = vpop.permute.xlu0 %983
        %985 = vrot.lane.b32.xlu0 %v967, 126
        %v986 = vpop.permute.xlu0 %985
        %987 = vrot.lane.b32.xlu0 %v970, 126
        %v988 = vpop.permute.xlu0 %987
        %989 = vrot.lane.b32.xlu0 %v972, 126
        %v990 = vpop.permute.xlu0 %989
        %991 = vrot.lane.b32.xlu0 %v975, 126
        %v992 = vpop.permute.xlu0 %991
        %993 = vrot.lane.b32.xlu0 %v977, 126
        %v994 = vpop.permute.xlu0 %993
        %995 = vrot.lane.b32.xlu0 %v980, 126
        %v996 = vpop.permute.xlu0 %995
        %997 = vrot.lane.b32.xlu0 %v982, 126
        %v998 = vpop.permute.xlu0 %997
        %v1007 = vmax.f32 %v882, %v984
        %v1008 = vmax.f32 %v883, %v986
        %v1009 = vmax.f32 %v884, %v988
        %v1010 = vmax.f32 %v885, %v990
        %v1011 = vmax.f32 %v886, %v992
        %v1012 = vmax.f32 %v887, %v994
        %v1013 = vmax.f32 %v888, %v996
        %v1014 = vmax.f32 %v889, %v998
        %v1015 = vmin.f32 %v890, %v984
        %v1016 = vmin.f32 %v891, %v986
        %v1017 = vmin.f32 %v892, %v988
        %v1018 = vmin.f32 %v893, %v990
        %v1019 = vmin.f32 %v894, %v992
        %v1020 = vmin.f32 %v895, %v994
        %v1021 = vmin.f32 %v896, %v996
        %v1022 = vmin.f32 %v897, %v998
        %s1023 = scalar_lea.vmem %s281, 24
        %v1024 = vld [vmem:[%s1023] sm:$0x1]
        %v1025 = vld [vmem:[%s1023 + $0x1] sm:$0x1]
        %v1026 = vld [vmem:[%s1023 + $0x2] sm:$0x1]
        %v1027 = vld [vmem:[%s1023 + $0x3] sm:$0x1]
        %v1032 = vlaneseq
        %v1033 = vshrl.u32 %v1032, 7
        %v1034 = vsub.s32 0, %v1033
        %v1035 = vrot.slane %v1024, %v1034
        %v1036 = vlaneseq
        %v1037 = vshrl.u32 %v1036, 7
        %v1038 = vsub.s32 0, %v1037
        %v1039 = vrot.slane %v1025, %v1038
        %v1040 = vlaneseq
        %v1041 = vshrl.u32 %v1040, 7
        %v1042 = vsub.s32 0, %v1041
        %v1043 = vrot.slane %v1026, %v1042
        %v1044 = vlaneseq
        %v1045 = vshrl.u32 %v1044, 7
        %v1046 = vsub.s32 0, %v1045
        %v1047 = vrot.slane %v1027, %v1046
        %1048 = vset.pattern.permute.xlu0 0
        %1049 = vperm.xlu0 %1048, %v1035
        %v1050 = vpop.permute.xlu0 %1049
        %1052 = vset.pattern.permute.xlu0 0
        %1053 = vperm.xlu0 %1052, %v1039
        %v1054 = vpop.permute.xlu0 %1053
        %1056 = vset.pattern.permute.xlu0 0
        %1057 = vperm.xlu0 %1056, %v1043
        %v1058 = vpop.permute.xlu0 %1057
        %1060 = vset.pattern.permute.xlu0 0
        %1061 = vperm.xlu0 %1060, %v1047
        %v1062 = vpop.permute.xlu0 %1061
        %v1064 = vmul.f32 %v409, %v1050
        %v1065 = vmul.f32 %v410, %v1050
        %v1066 = vmul.f32 %v411, %v1050
        %v1067 = vmul.f32 %v412, %v1054
        %v1068 = vmul.f32 %v413, %v1054
        %v1069 = vmul.f32 %v414, %v1054
        %v1070 = vmul.f32 %v415, %v1058
        %v1071 = vmul.f32 %v416, %v1058
        %v1072 = vmul.f32 %v417, %v1058
        %v1073 = vmul.f32 %v418, %v1062
        %v1074 = vmul.f32 %v419, %v1062
        %v1075 = vmul.f32 %v420, %v1062
        %vm1088 = vcmask 1045504
        %v1089 = vrot.slane %v1064, 2
        %v1090 = vrot.slane %v1065, 2
        %v1091 = vsel %vm1088, %v1089, %v1090
        %v1092 = vrot.slane %v1066, 2
        %v1093 = vsel %vm1088, %v1090, %v1092
        %v1094 = vrot.slane %v1067, 2
        %v1095 = vrot.slane %v1068, 2
        %v1096 = vsel %vm1088, %v1094, %v1095
        %v1097 = vrot.slane %v1069, 2
        %v1098 = vsel %vm1088, %v1095, %v1097
        %v1099 = vrot.slane %v1070, 2
        %v1100 = vrot.slane %v1071, 2
        %v1101 = vsel %vm1088, %v1099, %v1100
        %v1102 = vrot.slane %v1072, 2
        %v1103 = vsel %vm1088, %v1100, %v1102
        %v1104 = vrot.slane %v1073, 2
        %v1105 = vrot.slane %v1074, 2
        %v1106 = vsel %vm1088, %v1104, %v1105
        %v1107 = vrot.slane %v1075, 2
        %v1108 = vsel %vm1088, %v1105, %v1107
        %v1117 = vmax.f32 %v1007, %v1091
        %v1118 = vmax.f32 %v1008, %v1093
        %v1119 = vmax.f32 %v1009, %v1096
        %v1120 = vmax.f32 %v1010, %v1098
        %v1121 = vmax.f32 %v1011, %v1101
        %v1122 = vmax.f32 %v1012, %v1103
        %v1123 = vmax.f32 %v1013, %v1106
        %v1124 = vmax.f32 %v1014, %v1108
        %v1125 = vmin.f32 %v1015, %v1091
        %v1126 = vmin.f32 %v1016, %v1093
        %v1127 = vmin.f32 %v1017, %v1096
        %v1128 = vmin.f32 %v1018, %v1098
        %v1129 = vmin.f32 %v1019, %v1101
        %v1130 = vmin.f32 %v1020, %v1103
        %v1131 = vmin.f32 %v1021, %v1106
        %v1132 = vmin.f32 %v1022, %v1108
        %s1133 = scalar_lea.vmem %s281, 28
        %v1134 = vld [vmem:[%s1133] sm:$0x1]
        %v1135 = vld [vmem:[%s1133 + $0x1] sm:$0x1]
        %v1136 = vld [vmem:[%s1133 + $0x2] sm:$0x1]
        %v1137 = vld [vmem:[%s1133 + $0x3] sm:$0x1]
        %v1142 = vlaneseq
        %v1143 = vshrl.u32 %v1142, 7
        %v1144 = vsub.s32 0, %v1143
        %v1145 = vrot.slane %v1134, %v1144
        %v1146 = vlaneseq
        %v1147 = vshrl.u32 %v1146, 7
        %v1148 = vsub.s32 0, %v1147
        %v1149 = vrot.slane %v1135, %v1148
        %v1150 = vlaneseq
        %v1151 = vshrl.u32 %v1150, 7
        %v1152 = vsub.s32 0, %v1151
        %v1153 = vrot.slane %v1136, %v1152
        %v1154 = vlaneseq
        %v1155 = vshrl.u32 %v1154, 7
        %v1156 = vsub.s32 0, %v1155
        %v1157 = vrot.slane %v1137, %v1156
        %1158 = vset.pattern.permute.xlu0 0
        %1159 = vperm.xlu0 %1158, %v1145
        %v1160 = vpop.permute.xlu0 %1159
        %1162 = vset.pattern.permute.xlu0 0
        %1163 = vperm.xlu0 %1162, %v1149
        %v1164 = vpop.permute.xlu0 %1163
        %1166 = vset.pattern.permute.xlu0 0
        %1167 = vperm.xlu0 %1166, %v1153
        %v1168 = vpop.permute.xlu0 %1167
        %1170 = vset.pattern.permute.xlu0 0
        %1171 = vperm.xlu0 %1170, %v1157
        %v1172 = vpop.permute.xlu0 %1171
        %v1174 = vmul.f32 %v409, %v1160
        %v1175 = vmul.f32 %v410, %v1160
        %v1176 = vmul.f32 %v411, %v1160
        %v1177 = vmul.f32 %v412, %v1164
        %v1178 = vmul.f32 %v413, %v1164
        %v1179 = vmul.f32 %v414, %v1164
        %v1180 = vmul.f32 %v415, %v1168
        %v1181 = vmul.f32 %v416, %v1168
        %v1182 = vmul.f32 %v417, %v1168
        %v1183 = vmul.f32 %v418, %v1172
        %v1184 = vmul.f32 %v419, %v1172
        %v1185 = vmul.f32 %v420, %v1172
        %v1198 = vrot.slane %v1174, 2
        %v1199 = vrot.slane %v1175, 2
        %v1200 = vsel %vm1088, %v1198, %v1199
        %v1201 = vrot.slane %v1176, 2
        %v1202 = vsel %vm1088, %v1199, %v1201
        %v1203 = vrot.slane %v1177, 2
        %v1204 = vrot.slane %v1178, 2
        %v1205 = vsel %vm1088, %v1203, %v1204
        %v1206 = vrot.slane %v1179, 2
        %v1207 = vsel %vm1088, %v1204, %v1206
        %v1208 = vrot.slane %v1180, 2
        %v1209 = vrot.slane %v1181, 2
        %v1210 = vsel %vm1088, %v1208, %v1209
        %v1211 = vrot.slane %v1182, 2
        %v1212 = vsel %vm1088, %v1209, %v1211
        %v1213 = vrot.slane %v1183, 2
        %v1214 = vrot.slane %v1184, 2
        %v1215 = vsel %vm1088, %v1213, %v1214
        %v1216 = vrot.slane %v1185, 2
        %v1217 = vsel %vm1088, %v1214, %v1216
        %1218 = vrot.lane.b32.xlu0 %v1200, 127
        %v1219 = vpop.permute.xlu0 %1218
        %1220 = vrot.lane.b32.xlu0 %v1202, 127
        %v1221 = vpop.permute.xlu0 %1220
        %1222 = vrot.lane.b32.xlu0 %v1205, 127
        %v1223 = vpop.permute.xlu0 %1222
        %1224 = vrot.lane.b32.xlu0 %v1207, 127
        %v1225 = vpop.permute.xlu0 %1224
        %1226 = vrot.lane.b32.xlu0 %v1210, 127
        %v1227 = vpop.permute.xlu0 %1226
        %1228 = vrot.lane.b32.xlu0 %v1212, 127
        %v1229 = vpop.permute.xlu0 %1228
        %1230 = vrot.lane.b32.xlu0 %v1215, 127
        %v1231 = vpop.permute.xlu0 %1230
        %1232 = vrot.lane.b32.xlu0 %v1217, 127
        %v1233 = vpop.permute.xlu0 %1232
        %v1242 = vmax.f32 %v1117, %v1219
        %v1243 = vmax.f32 %v1118, %v1221
        %v1244 = vmax.f32 %v1119, %v1223
        %v1245 = vmax.f32 %v1120, %v1225
        %v1246 = vmax.f32 %v1121, %v1227
        %v1247 = vmax.f32 %v1122, %v1229
        %v1248 = vmax.f32 %v1123, %v1231
        %v1249 = vmax.f32 %v1124, %v1233
        %v1250 = vmin.f32 %v1125, %v1219
        %v1251 = vmin.f32 %v1126, %v1221
        %v1252 = vmin.f32 %v1127, %v1223
        %v1253 = vmin.f32 %v1128, %v1225
        %v1254 = vmin.f32 %v1129, %v1227
        %v1255 = vmin.f32 %v1130, %v1229
        %v1256 = vmin.f32 %v1131, %v1231
        %v1257 = vmin.f32 %v1132, %v1233
        %s1258 = scalar_lea.vmem %s281, 32
        %v1259 = vld [vmem:[%s1258] sm:$0x1]
        %v1260 = vld [vmem:[%s1258 + $0x1] sm:$0x1]
        %v1261 = vld [vmem:[%s1258 + $0x2] sm:$0x1]
        %v1262 = vld [vmem:[%s1258 + $0x3] sm:$0x1]
        %v1267 = vlaneseq
        %v1268 = vshrl.u32 %v1267, 7
        %v1269 = vsub.s32 0, %v1268
        %v1270 = vrot.slane %v1259, %v1269
        %v1271 = vlaneseq
        %v1272 = vshrl.u32 %v1271, 7
        %v1273 = vsub.s32 0, %v1272
        %v1274 = vrot.slane %v1260, %v1273
        %v1275 = vlaneseq
        %v1276 = vshrl.u32 %v1275, 7
        %v1277 = vsub.s32 0, %v1276
        %v1278 = vrot.slane %v1261, %v1277
        %v1279 = vlaneseq
        %v1280 = vshrl.u32 %v1279, 7
        %v1281 = vsub.s32 0, %v1280
        %v1282 = vrot.slane %v1262, %v1281
        %1283 = vset.pattern.permute.xlu0 0
        %1284 = vperm.xlu0 %1283, %v1270
        %v1285 = vpop.permute.xlu0 %1284
        %1287 = vset.pattern.permute.xlu0 0
        %1288 = vperm.xlu0 %1287, %v1274
        %v1289 = vpop.permute.xlu0 %1288
        %1291 = vset.pattern.permute.xlu0 0
        %1292 = vperm.xlu0 %1291, %v1278
        %v1293 = vpop.permute.xlu0 %1292
        %1295 = vset.pattern.permute.xlu0 0
        %1296 = vperm.xlu0 %1295, %v1282
        %v1297 = vpop.permute.xlu0 %1296
        %v1299 = vmul.f32 %v409, %v1285
        %v1300 = vmul.f32 %v410, %v1285
        %v1301 = vmul.f32 %v411, %v1285
        %v1302 = vmul.f32 %v412, %v1289
        %v1303 = vmul.f32 %v413, %v1289
        %v1304 = vmul.f32 %v414, %v1289
        %v1305 = vmul.f32 %v415, %v1293
        %v1306 = vmul.f32 %v416, %v1293
        %v1307 = vmul.f32 %v417, %v1293
        %v1308 = vmul.f32 %v418, %v1297
        %v1309 = vmul.f32 %v419, %v1297
        %v1310 = vmul.f32 %v420, %v1297
        %v1323 = vrot.slane %v1299, 2
        %v1324 = vrot.slane %v1300, 2
        %v1325 = vsel %vm1088, %v1323, %v1324
        %v1326 = vrot.slane %v1301, 2
        %v1327 = vsel %vm1088, %v1324, %v1326
        %v1328 = vrot.slane %v1302, 2
        %v1329 = vrot.slane %v1303, 2
        %v1330 = vsel %vm1088, %v1328, %v1329
        %v1331 = vrot.slane %v1304, 2
        %v1332 = vsel %vm1088, %v1329, %v1331
        %v1333 = vrot.slane %v1305, 2
        %v1334 = vrot.slane %v1306, 2
        %v1335 = vsel %vm1088, %v1333, %v1334
        %v1336 = vrot.slane %v1307, 2
        %v1337 = vsel %vm1088, %v1334, %v1336
        %v1338 = vrot.slane %v1308, 2
        %v1339 = vrot.slane %v1309, 2
        %v1340 = vsel %vm1088, %v1338, %v1339
        %v1341 = vrot.slane %v1310, 2
        %v1342 = vsel %vm1088, %v1339, %v1341
        %1343 = vrot.lane.b32.xlu0 %v1325, 126
        %v1344 = vpop.permute.xlu0 %1343
        %1345 = vrot.lane.b32.xlu0 %v1327, 126
        %v1346 = vpop.permute.xlu0 %1345
        %1347 = vrot.lane.b32.xlu0 %v1330, 126
        %v1348 = vpop.permute.xlu0 %1347
        %1349 = vrot.lane.b32.xlu0 %v1332, 126
        %v1350 = vpop.permute.xlu0 %1349
        %1351 = vrot.lane.b32.xlu0 %v1335, 126
        %v1352 = vpop.permute.xlu0 %1351
        %1353 = vrot.lane.b32.xlu0 %v1337, 126
        %v1354 = vpop.permute.xlu0 %1353
        %1355 = vrot.lane.b32.xlu0 %v1340, 126
        %v1356 = vpop.permute.xlu0 %1355
        %1357 = vrot.lane.b32.xlu0 %v1342, 126
        %v1358 = vpop.permute.xlu0 %1357
        %v1367 = vmax.f32 %v1242, %v1344
        %v1368 = vmax.f32 %v1243, %v1346
        %v1369 = vmax.f32 %v1244, %v1348
        %v1370 = vmax.f32 %v1245, %v1350
        %v1371 = vmax.f32 %v1246, %v1352
        %v1372 = vmax.f32 %v1247, %v1354
        %v1373 = vmax.f32 %v1248, %v1356
        %v1374 = vmax.f32 %v1249, %v1358
        %v1375 = vmin.f32 %v1250, %v1344
        %v1376 = vmin.f32 %v1251, %v1346
        %v1377 = vmin.f32 %v1252, %v1348
        %v1378 = vmin.f32 %v1253, %v1350
        %v1379 = vmin.f32 %v1254, %v1352
        %v1380 = vmin.f32 %v1255, %v1354
        %v1381 = vmin.f32 %v1256, %v1356
        %v1382 = vmin.f32 %v1257, %v1358
        %v1383 = vld [vmem:[%s291] sm:$0x1]
        %v1384 = vld [vmem:[%s291 + $0x1] sm:$0x1]
        %v1385 = vld [vmem:[%s291 + $0x2] sm:$0x1]
        %v1386 = vld [vmem:[%s291 + $0x3] sm:$0x1]
        %v1387 = vmul.f32 %v1383, 10.0
        %v1388 = vmul.f32 %v1384, 10.0
        %v1389 = vmul.f32 %v1385, 10.0
        %v1390 = vmul.f32 %v1386, 10.0
        %v1391 = vxor.u32 %v1387, 2147483648
        %v1392 = vxor.u32 %v1388, 2147483648
        %v1393 = vxor.u32 %v1389, 2147483648
        %v1394 = vxor.u32 %v1390, 2147483648
        %v1395 = vmul.f32 %v1391, 1.442695
        %v1396 = vpow.pop %v1395
        %v1397 = vmul.f32 %v1392, 1.442695
        %v1398 = vpow.pop %v1397
        %v1399 = vmul.f32 %v1393, 1.442695
        %v1400 = vpow.pop %v1399
        %v1401 = vmul.f32 %v1394, 1.442695
        %v1402 = vpow.pop %v1401
        %v1403 = vadd.f32 %v1396, 1.0
        %v1404 = vadd.f32 %v1398, 1.0
        %v1405 = vadd.f32 %v1400, 1.0
        %v1406 = vadd.f32 %v1402, 1.0
        %v1407 = vrcp.pop %v1403
        %v1408 = vmul.f32 1.0, %v1407
        %v1409 = vrcp.pop %v1404
        %v1410 = vmul.f32 1.0, %v1409
        %v1411 = vrcp.pop %v1405
        %v1412 = vmul.f32 1.0, %v1411
        %v1413 = vrcp.pop %v1406
        %v1414 = vmul.f32 1.0, %v1413
        %v1415 = vsub.f32 %v1367, %v1375
        %v1416 = vsub.f32 %v1368, %v1376
        %v1417 = vsub.f32 %v1369, %v1377
        %v1418 = vsub.f32 %v1370, %v1378
        %v1419 = vsub.f32 %v1371, %v1379
        %v1420 = vsub.f32 %v1372, %v1380
        %v1421 = vsub.f32 %v1373, %v1381
        %v1422 = vsub.f32 %v1374, %v1382
        %v1427 = vlaneseq
        %v1428 = vshrl.u32 %v1427, 7
        %v1429 = vsub.s32 0, %v1428
        %v1430 = vrot.slane %v1408, %v1429
        %v1431 = vlaneseq
        %v1432 = vshrl.u32 %v1431, 7
        %v1433 = vsub.s32 0, %v1432
        %v1434 = vrot.slane %v1410, %v1433
        %v1435 = vlaneseq
        %v1436 = vshrl.u32 %v1435, 7
        %v1437 = vsub.s32 0, %v1436
        %v1438 = vrot.slane %v1412, %v1437
        %v1439 = vlaneseq
        %v1440 = vshrl.u32 %v1439, 7
        %v1441 = vsub.s32 0, %v1440
        %v1442 = vrot.slane %v1414, %v1441
        %1443 = vset.pattern.permute.xlu0 0
        %1444 = vperm.xlu0 %1443, %v1430
        %v1445 = vpop.permute.xlu0 %1444
        %1447 = vset.pattern.permute.xlu0 0
        %1448 = vperm.xlu0 %1447, %v1434
        %v1449 = vpop.permute.xlu0 %1448
        %1451 = vset.pattern.permute.xlu0 0
        %1452 = vperm.xlu0 %1451, %v1438
        %v1453 = vpop.permute.xlu0 %1452
        %1455 = vset.pattern.permute.xlu0 0
        %1456 = vperm.xlu0 %1455, %v1442
        %v1457 = vpop.permute.xlu0 %1456
        %v1459 = vmul.f32 %v1415, %v1445
        %v1460 = vmul.f32 %v1416, %v1445
        %v1461 = vmul.f32 %v1417, %v1449
        %v1462 = vmul.f32 %v1418, %v1449
        %v1463 = vmul.f32 %v1419, %v1453
        %v1464 = vmul.f32 %v1420, %v1453
        %v1465 = vmul.f32 %v1421, %v1457
        %v1466 = vmul.f32 %v1422, %v1457
        %v1467 = vadd.f32 %v1375, %v1459
        %v1468 = vadd.f32 %v1376, %v1460
        %v1469 = vadd.f32 %v1377, %v1461
        %v1470 = vadd.f32 %v1378, %v1462
        %v1471 = vadd.f32 %v1379, %v1463
        %v1472 = vadd.f32 %v1380, %v1464
        %v1473 = vadd.f32 %v1381, %v1465
        %v1474 = vadd.f32 %v1382, %v1466
        %v1475 = vsub.f32 %v1467, %v324
        %v1476 = vsub.f32 %v1468, %v324
        %v1477 = vsub.f32 %v1469, %v328
        %v1478 = vsub.f32 %v1470, %v328
        %v1479 = vsub.f32 %v1471, %v332
        %v1480 = vsub.f32 %v1472, %v332
        %v1481 = vsub.f32 %v1473, %v336
        %v1482 = vsub.f32 %v1474, %v336
        %vm1483 = vcmask 130048
        %1484 = vst.msk [vmem:[%s276] sm:$0xff] %vm1483, %v1475
        %1485 = vst.msk [vmem:[%s276 + $0x8] sm:$0xff] %vm1483, %v1476
        %1486 = vst.msk [vmem:[%s276 + $0x10] sm:$0xff] %vm1483, %v1477
        %1487 = vst.msk [vmem:[%s276 + $0x18] sm:$0xff] %vm1483, %v1478
        %1488 = vst.msk [vmem:[%s276 + $0x20] sm:$0xff] %vm1483, %v1479
        %1489 = vst.msk [vmem:[%s276 + $0x28] sm:$0xff] %vm1483, %v1480
        %1490 = vst.msk [vmem:[%s276 + $0x30] sm:$0xff] %vm1483, %v1481
        %1491 = vst.msk [vmem:[%s276 + $0x38] sm:$0xff] %vm1483, %v1482
        %s1492 = sand.u32 %s149, 1
        %s1493 = scalar_lea.sflag [#allocation5], %s1492
        %s1494 = sand.u32 %s149, 1
        %s1495 = smul.addr %s1494, 64
        %s1496 = scalar_lea.vmem [#allocation6], %s1495
        // Predicated region
        $region41: #{tpu_custom_call.1} parent=35 // pred_check
          %p1497 = pneg %p159
        $region42: #{tpu_custom_call.1} parent=35 // pred_check_branch
          %1499 = sbr.rel (%p1497) target = $region44
        $region43: #{tpu_custom_call.1} parent=35 // pred_region
          %s1500 = smul.u32 4, %s26
          %s1502 = ssub.s32 1024, 1024
          %1503 = vsyncadd %s1493, %s1502
          %s1504 = smul.addr %s1500, 2
          %s1505 = smul.addr %s25, 8
          %s1506 = sadd.s32 %s1504, %s1505
          %s1507 = smul.addr %s1506, 128
          %s1508 = scalar_lea.hbm %s4, %s1507
          %s1509 = sshll.u32 %s1496, 4
          %s1510 = int_to_ptr.vmem [resolvable:$true] %s1509
          %1515 = dma.vmem_to_hbm [thread:$0]  %s1510, 1024, %s1508, %s1493, 128, 128, 8
        $region44: #{tpu_custom_call.1} parent=35 // pred_fallthru
          _
      $region36: #{tpu_custom_call.1} parent=5 // pred_fallthru
        _
      %p1516 = scmp.le.s32.totalorder 2, %s16
      // Predicated region
      $region45: #{tpu_custom_call.1} parent=5 // pred_check
        %p1517 = pneg %p1516
      $region46: #{tpu_custom_call.1} parent=5 // pred_check_branch
        %1519 = sbr.rel (%p1517) target = $region48
      $region47: #{tpu_custom_call.1} parent=5 // pred_region
        %s1520 = ssub.s32 %s16, 2
        // Predicated region
        $region49: #{tpu_custom_call.1} parent=47 // pred_check
          %p1521 = pneg %p165
        $region50: #{tpu_custom_call.1} parent=47 // pred_check_branch
          %1523 = sbr.rel (%p1521) target = $region52
        $region51: #{tpu_custom_call.1} parent=47 // pred_region
          %s1524 = sand.u32 %s150, 1
          %s1525 = scalar_lea.sflag [#allocation5], %s1524
          %s1526 = sand.u32 %s150, 1
          %s1527 = smul.addr %s1526, 64
          %s1528 = scalar_lea.vmem [#allocation6], %s1527
          %1529 = dma.done %s1525, 1024
        $region52: #{tpu_custom_call.1} parent=47 // pred_fallthru
          _
      $region48: #{tpu_custom_call.1} parent=5 // pred_fallthru
        _
    $region6: #{tpu_custom_call.1} parent=1 // loop_footer
      %s20 = sadd.s32 1, %s16
    $region7: #{tpu_custom_call.1} parent=1 // loop_footer_branch
      %15 = sbr.rel target = $region3
    $region8: #{tpu_custom_call.1} parent=1 // loop_exit
      _
    %1530 = vsyncpa [#allocation4], 1
    %s1531 = scalar_lea.sflag [#allocation4], 1
    %1532 = vsyncpa %s1531, 1
    %1533 = vsyncpa [#allocation5], 1
    %s1534 = scalar_lea.sflag [#allocation5], 1
    %1535 = vsyncpa %s1534, 1

</llo_original>
